<compile_context>
chip_gen: v6e
topology: v6e:2x2x1
jax: 0.10.0
libtpu: 0.0.40
codegen_flags: <defaults>
</compile_context>

<pallas_src>
import functools

import jax
import jax.numpy as jnp
from jax.experimental import pallas as pl
from jax.experimental.pallas import tpu as pltpu


def _seg_loss_kernel(x_ref, lbl_ref,
                     tp_ref, sp_ref, sy_ref, ce_ref,
                     acc_tp, acc_p, acc_y, acc_ce,
                     *, hw):
    ti = pl.program_id(1)
    nt = pl.num_programs(1)

    @pl.when(ti == 0)
    def _():
        acc_tp[...] = jnp.zeros_like(acc_tp)
        acc_p[...] = jnp.zeros_like(acc_p)
        acc_y[...] = jnp.zeros_like(acc_y)
        acc_ce[...] = jnp.zeros_like(acc_ce)

    x = x_ref[0].astype(jnp.float32)              # (C, T) logits, classes on sublanes
    lbl = lbl_ref[0]                              # (1, T) int32 labels
    c, tile = x.shape

    # mask off the ragged tail of the last spatial tile (no wrapper-side padding)
    col = jax.lax.broadcasted_iota(jnp.int32, (1, tile), 1) + ti * tile
    valid = col < hw                              # (1, T) bool

    # one-hot of labels along the class (sublane) axis
    cls = jax.lax.broadcasted_iota(jnp.int32, (c, tile), 0)
    y = jnp.where(valid & (cls == lbl), 1.0, 0.0)                 # (C, T)

    # softmax over the class (sublane) axis
    m = jnp.max(x, axis=0, keepdims=True)         # (1, T)
    ex = jnp.exp(x - m)
    denom = jnp.sum(ex, axis=0, keepdims=True)    # (1, T)
    p = ex * pl.reciprocal(denom)                 # softmax probs
    p = jnp.where(valid, p, 0.0)                  # exact zeros on padded columns

    # cross-entropy per pixel: -(logit[label] - m - log(denom))
    x_lbl = jnp.sum(y * x, axis=0, keepdims=True)                 # (1, T)
    ce_cols = jnp.where(valid, jnp.log(denom) + m - x_lbl, 0.0)

    # lane-wide elementwise accumulation: no cross-lane work in steady state
    acc_tp[...] += p * y
    acc_p[...] += p
    acc_y[...] += y
    acc_ce[...] += ce_cols

    @pl.when(ti == nt - 1)
    def _():
        tp_ref[0] = jnp.sum(acc_tp[...], axis=1, keepdims=True)   # (C, 1)
        sp_ref[0] = jnp.sum(acc_p[...], axis=1, keepdims=True)
        sy_ref[0] = jnp.sum(acc_y[...], axis=1, keepdims=True)
        ce_ref[0] = jnp.sum(acc_ce[...], axis=1, keepdims=True)   # (1, 1)


def _pick_lane_tile(hw, c, cap):
    # keep the f32 logits block around ~2 MiB (Pallas double-buffers it)
    budget_lanes = (2 * 1024 * 1024) // (4 * max(c, 1))
    tile = min(cap, max(512, (budget_lanes // 128) * 128))
    if hw <= tile:
        return hw            # full spatial extent: one step, no ragged tail
    return tile              # multiple of 128; ragged tail masked in-kernel


@functools.partial(jax.jit, static_argnames=("lane_tile_cap",))
def segmentation_loss_dice_ce(logits_nchw, targets_bhw, lane_tile_cap=32768):
    """Equivalent of SegmentationLosses('dice_ce')(logits, targets).

    logits_nchw: (b, c, h, w) float (any float dtype; f32 compute in-kernel)
    targets_bhw: (b, h, w) integer class labels
    """
    smooth = 1e-5
    b, c, h, w = logits_nchw.shape
    hw = h * w
    n = b * hw

    # free reshapes only: no transpose, no pad, no dtype cast of the logits
    x = logits_nchw.reshape(b, c, hw)
    lbl = targets_bhw.reshape(b, 1, hw).astype(jnp.int32)

    tile = _pick_lane_tile(hw, c, lane_tile_cap)
    nt = pl.cdiv(hw, tile)

    kernel = functools.partial(_seg_loss_kernel, hw=hw)

    tp_b, sp_b, sy_b, ce_b = pl.pallas_call(
        kernel,
        out_shape=(
            jax.ShapeDtypeStruct((b, c, 1), jnp.float32),   # tp per (batch, class)
            jax.ShapeDtypeStruct((b, c, 1), jnp.float32),   # sum softmax per (batch, class)
            jax.ShapeDtypeStruct((b, c, 1), jnp.float32),   # label counts per (batch, class)
            jax.ShapeDtypeStruct((b, 1, 1), jnp.float32),   # cross-entropy sum per batch
        ),
        grid_spec=pltpu.PrefetchScalarGridSpec(
            num_scalar_prefetch=0,
            grid=(b, nt),
            in_specs=[
                pl.BlockSpec((1, c, tile), lambda bi, ti: (bi, 0, ti)),
                pl.BlockSpec((1, 1, tile), lambda bi, ti: (bi, 0, ti)),
            ],
            out_specs=[
                pl.BlockSpec((1, c, 1), lambda bi, ti: (bi, 0, 0)),
                pl.BlockSpec((1, c, 1), lambda bi, ti: (bi, 0, 0)),
                pl.BlockSpec((1, c, 1), lambda bi, ti: (bi, 0, 0)),
                pl.BlockSpec((1, 1, 1), lambda bi, ti: (bi, 0, 0)),
            ],
            scratch_shapes=[
                pltpu.VMEM((c, tile), jnp.float32),
                pltpu.VMEM((c, tile), jnp.float32),
                pltpu.VMEM((c, tile), jnp.float32),
                pltpu.VMEM((1, tile), jnp.float32),
            ],
        ),
        compiler_params=pltpu.CompilerParams(
            dimension_semantics=("parallel", "arbitrary"),
        ),
    )(x, lbl)

    tp = jnp.sum(tp_b[:, :, 0], axis=0)           # (c,)
    sum_p = jnp.sum(sp_b[:, :, 0], axis=0)        # (c,)  == tp + fp
    sum_y = jnp.sum(sy_b[:, :, 0], axis=0)        # (c,)  == tp + fn

    # SoftDiceLoss (do_bg=False): 2*tp + fp + fn == sum_p + sum_y
    nominator = 2.0 * tp + smooth
    denominator = sum_p + sum_y + smooth
    dc = nominator / (denominator + 1e-8)
    dice_loss = 1.0 - jnp.mean(dc[1:])            # drop background class

    # CrossEntropyLoss(mean) over all b*h*w pixels
    ce_loss = jnp.sum(ce_b) / n

    # DiceCrossEntropyLoss: weight_ce=1, weight_dice=1, log_dice=False
    return ce_loss + dice_loss


def _reference_loss(logits_nchw, targets_bhw):
    """Plain-JAX reference mirroring the PyTorch code, for sanity checking."""
    smooth = 1e-5
    b, c, h, w = logits_nchw.shape
    p = jax.nn.softmax(logits_nchw.astype(jnp.float32), axis=1)
    y = jax.nn.one_hot(targets_bhw, c, axis=1, dtype=jnp.float32)  # (b,c,h,w)
    tp = jnp.sum(p * y, axis=(0, 2, 3))
    fp = jnp.sum(p * (1 - y), axis=(0, 2, 3))
    fn = jnp.sum((1 - p) * y, axis=(0, 2, 3))
    dc = (2 * tp + smooth) / (2 * tp + fp + fn + smooth + 1e-8)
    dice_loss = 1.0 - dc[1:].mean()
    logp = jax.nn.log_softmax(logits_nchw.astype(jnp.float32), axis=1)
    ce = -jnp.mean(jnp.sum(y * logp, axis=1))
    return ce + dice_loss


if __name__ == "__main__":
    key = jax.random.PRNGKey(0)
    k1, k2 = jax.random.split(key)

    b, c, h, w = 2, 4, 16, 16
    logits = jax.random.normal(k1, (b, c, h, w), dtype=jnp.float32)
    targets = jax.random.randint(k2, (b, h, w), 0, c, dtype=jnp.int32)

    loss = segmentation_loss_dice_ce(logits, targets)
    loss = jax.block_until_ready(loss)

    ref = _reference_loss(logits, targets)
    assert jnp.allclose(loss, ref, rtol=1e-5, atol=1e-5), (loss, ref)

    print("KERNEL_OK")
</pallas_src>

<mosaic_0001>
module attributes {stable_mosaic.version = 11 : i64} {
  func.func @_seg_loss_kernel(%arg0: i32, %arg1: i32, %arg2: memref<1x4x256xf32, #tpu.memory_space<vmem>>, %arg3: memref<1x1x256xi32, #tpu.memory_space<vmem>>, %arg4: memref<1x4x1xf32, #tpu.memory_space<vmem>>, %arg5: memref<1x4x1xf32, #tpu.memory_space<vmem>>, %arg6: memref<1x4x1xf32, #tpu.memory_space<vmem>>, %arg7: memref<1x1x1xf32, #tpu.memory_space<vmem>>, %arg8: memref<4x256xf32, #tpu.memory_space<vmem>>, %arg9: memref<4x256xf32, #tpu.memory_space<vmem>>, %arg10: memref<4x256xf32, #tpu.memory_space<vmem>>, %arg11: memref<1x256xf32, #tpu.memory_space<vmem>>) attributes {dimension_semantics = [#tpu.dimension_semantics<parallel>, #tpu.dimension_semantics<arbitrary>], iteration_bounds = array<i64: 2, 1>, scalar_prefetch = 0 : i64, scratch_operands = 4 : i64, tpu.core_type = #tpu.core_type<tc>, window_params = [{transform_indices = @transform_0, window_bounds = array<i64: 1, 4, 256>}, {transform_indices = @transform_1, window_bounds = array<i64: 1, 1, 256>}, {transform_indices = @transform_2, window_bounds = array<i64: 1, 4, 1>}, {transform_indices = @transform_3, window_bounds = array<i64: 1, 4, 1>}, {transform_indices = @transform_4, window_bounds = array<i64: 1, 4, 1>}, {transform_indices = @transform_5, window_bounds = array<i64: 1, 1, 1>}]} {
    %c0_i32 = arith.constant 0 : i32
    %0 = arith.cmpi eq, %arg1, %c0_i32 : i32
    %1 = arith.extui %0 : i1 to i32
    %c0_i32_0 = arith.constant 0 : i32
    %2 = arith.cmpi ne, %1, %c0_i32_0 : i32
    scf.if %2 {
      %cst_31 = arith.constant 0.000000e+00 : f32
      %59 = vector.broadcast %cst_31 : f32 to vector<4x256xf32>
      %c0_32 = arith.constant 0 : index
      %c0_33 = arith.constant 0 : index
      %60 = vector.load %arg8[%c0_32, %c0_33] : memref<4x256xf32, #tpu.memory_space<vmem>>, vector<4x256xf32>
      tpu.vector_store %arg8[%c0_32, %c0_33], %59 {strides = array<i32>} : memref<4x256xf32, #tpu.memory_space<vmem>>, vector<4x256xf32>,
      %cst_34 = arith.constant 0.000000e+00 : f32
      %61 = vector.broadcast %cst_34 : f32 to vector<4x256xf32>
      %c0_35 = arith.constant 0 : index
      %c0_36 = arith.constant 0 : index
      %62 = vector.load %arg9[%c0_35, %c0_36] : memref<4x256xf32, #tpu.memory_space<vmem>>, vector<4x256xf32>
      tpu.vector_store %arg9[%c0_35, %c0_36], %61 {strides = array<i32>} : memref<4x256xf32, #tpu.memory_space<vmem>>, vector<4x256xf32>,
      %cst_37 = arith.constant 0.000000e+00 : f32
      %63 = vector.broadcast %cst_37 : f32 to vector<4x256xf32>
      %c0_38 = arith.constant 0 : index
      %c0_39 = arith.constant 0 : index
      %64 = vector.load %arg10[%c0_38, %c0_39] : memref<4x256xf32, #tpu.memory_space<vmem>>, vector<4x256xf32>
      tpu.vector_store %arg10[%c0_38, %c0_39], %63 {strides = array<i32>} : memref<4x256xf32, #tpu.memory_space<vmem>>, vector<4x256xf32>,
      %cst_40 = arith.constant 0.000000e+00 : f32
      %65 = vector.broadcast %cst_40 : f32 to vector<1x256xf32>
      %c0_41 = arith.constant 0 : index
      %c0_42 = arith.constant 0 : index
      %66 = vector.load %arg11[%c0_41, %c0_42] : memref<1x256xf32, #tpu.memory_space<vmem>>, vector<1x256xf32>
      tpu.vector_store %arg11[%c0_41, %c0_42], %65 {strides = array<i32>} : memref<1x256xf32, #tpu.memory_space<vmem>>, vector<1x256xf32>,
    } else {
    }
    %c0 = arith.constant 0 : index
    %c0_1 = arith.constant 0 : index
    %c0_2 = arith.constant 0 : index
    %3 = vector.load %arg2[%c0, %c0_1, %c0_2] : memref<1x4x256xf32, #tpu.memory_space<vmem>>, vector<1x4x256xf32>
    %4 = vector.shape_cast %3 : vector<1x4x256xf32> to vector<4x256xf32>
    %c0_3 = arith.constant 0 : index
    %c0_4 = arith.constant 0 : index
    %c0_5 = arith.constant 0 : index
    %5 = vector.load %arg3[%c0_3, %c0_4, %c0_5] : memref<1x1x256xi32, #tpu.memory_space<vmem>>, vector<1x1x256xi32>
    %6 = vector.shape_cast %5 : vector<1x1x256xi32> to vector<1x256xi32>
    %7 = tpu.iota {dimensions = array<i32: 1>} : vector<1x256xi32>
    %c256_i32 = arith.constant 256 : i32
    %8 = arith.muli %arg1, %c256_i32 : i32
    %9 = vector.broadcast %8 : i32 to vector<1x256xi32>
    %10 = arith.addi %7, %9 : vector<1x256xi32>
    %c256_i32_6 = arith.constant 256 : i32
    %11 = vector.broadcast %c256_i32_6 : i32 to vector<1x256xi32>
    %12 = arith.cmpi slt, %10, %11 : vector<1x256xi32>
    %13 = tpu.iota {dimensions = array<i32: 0>} : vector<4x256xi32>
    %14 = vector.broadcast %6 : vector<1x256xi32> to vector<4x256xi32>
    %15 = arith.cmpi eq, %13, %14 : vector<4x256xi32>
    %16 = vector.broadcast %12 : vector<1x256xi1> to vector<4x256xi1>
    %17 = arith.andi %16, %15 : vector<4x256xi1>
    %cst = arith.constant 1.000000e+00 : f32
    %cst_7 = arith.constant 0.000000e+00 : f32
    %18 = vector.broadcast %cst : f32 to vector<4x256xf32>
    %19 = vector.broadcast %cst_7 : f32 to vector<4x256xf32>
    %20 = arith.select %17, %18, %19 : vector<4x256xi1>, vector<4x256xf32>
    %cst_8 = arith.constant dense<0xFF800000> : vector<256xf32>
    %21 = vector.multi_reduction <maximumf>, %4, %cst_8 [0] : vector<4x256xf32> to vector<256xf32>
    %22 = vector.shape_cast %21 : vector<256xf32> to vector<1x256xf32>
    %23 = vector.broadcast %22 : vector<1x256xf32> to vector<4x256xf32>
    %24 = arith.subf %4, %23 : vector<4x256xf32>
    %25 = math.exp %24 : vector<4x256xf32>
    %cst_9 = arith.constant dense<0.000000e+00> : vector<256xf32>
    %26 = vector.multi_reduction <add>, %25, %cst_9 [0] : vector<4x256xf32> to vector<256xf32>
    %27 = vector.shape_cast %26 : vector<256xf32> to vector<1x256xf32>
    %28 = tpu.reciprocal %27 : vector<1x256xf32> -> vector<1x256xf32>
    %29 = vector.broadcast %28 : vector<1x256xf32> to vector<4x256xf32>
    %30 = arith.mulf %25, %29 : vector<4x256xf32>
    %cst_10 = arith.constant 0.000000e+00 : f32
    %31 = vector.shape_cast %12 : vector<1x256xi1> to vector<1x256xi1>
    %32 = vector.broadcast %31 : vector<1x256xi1> to vector<4x256xi1>
    %33 = vector.broadcast %cst_10 : f32 to vector<4x256xf32>
    %34 = arith.select %32, %30, %33 : vector<4x256xi1>, vector<4x256xf32>
    %35 = arith.mulf %20, %4 : vector<4x256xf32>
    %cst_11 = arith.constant dense<0.000000e+00> : vector<256xf32>
    %36 = vector.multi_reduction <add>, %35, %cst_11 [0] : vector<4x256xf32> to vector<256xf32>
    %37 = vector.shape_cast %36 : vector<256xf32> to vector<1x256xf32>
    %38 = math.log %27 : vector<1x256xf32>
    %39 = arith.addf %38, %22 : vector<1x256xf32>
    %40 = arith.subf %39, %37 : vector<1x256xf32>
    %cst_12 = arith.constant 0.000000e+00 : f32
    %41 = vector.broadcast %cst_12 : f32 to vector<1x256xf32>
    %42 = arith.select %12, %40, %41 : vector<1x256xi1>, vector<1x256xf32>
    %c0_13 = arith.constant 0 : index
    %c0_14 = arith.constant 0 : index
    %43 = vector.load %arg8[%c0_13, %c0_14] : memref<4x256xf32, #tpu.memory_space<vmem>>, vector<4x256xf32>
    %44 = arith.mulf %34, %20 : vector<4x256xf32>
    %45 = arith.addf %43, %44 : vector<4x256xf32>
    %c0_15 = arith.constant 0 : index
    %c0_16 = arith.constant 0 : index
    %46 = vector.load %arg8[%c0_15, %c0_16] : memref<4x256xf32, #tpu.memory_space<vmem>>, vector<4x256xf32>
    tpu.vector_store %arg8[%c0_15, %c0_16], %45 {strides = array<i32>} : memref<4x256xf32, #tpu.memory_space<vmem>>, vector<4x256xf32>,
    %c0_17 = arith.constant 0 : index
    %c0_18 = arith.constant 0 : index
    %47 = vector.load %arg9[%c0_17, %c0_18] : memref<4x256xf32, #tpu.memory_space<vmem>>, vector<4x256xf32>
    %48 = arith.addf %47, %34 : vector<4x256xf32>
    %c0_19 = arith.constant 0 : index
    %c0_20 = arith.constant 0 : index
    %49 = vector.load %arg9[%c0_19, %c0_20] : memref<4x256xf32, #tpu.memory_space<vmem>>, vector<4x256xf32>
    tpu.vector_store %arg9[%c0_19, %c0_20], %48 {strides = array<i32>} : memref<4x256xf32, #tpu.memory_space<vmem>>, vector<4x256xf32>,
    %c0_21 = arith.constant 0 : index
    %c0_22 = arith.constant 0 : index
    %50 = vector.load %arg10[%c0_21, %c0_22] : memref<4x256xf32, #tpu.memory_space<vmem>>, vector<4x256xf32>
    %51 = arith.addf %50, %20 : vector<4x256xf32>
    %c0_23 = arith.constant 0 : index
    %c0_24 = arith.constant 0 : index
    %52 = vector.load %arg10[%c0_23, %c0_24] : memref<4x256xf32, #tpu.memory_space<vmem>>, vector<4x256xf32>
    tpu.vector_store %arg10[%c0_23, %c0_24], %51 {strides = array<i32>} : memref<4x256xf32, #tpu.memory_space<vmem>>, vector<4x256xf32>,
    %c0_25 = arith.constant 0 : index
    %c0_26 = arith.constant 0 : index
    %53 = vector.load %arg11[%c0_25, %c0_26] : memref<1x256xf32, #tpu.memory_space<vmem>>, vector<1x256xf32>
    %54 = arith.addf %53, %42 : vector<1x256xf32>
    %c0_27 = arith.constant 0 : index
    %c0_28 = arith.constant 0 : index
    %55 = vector.load %arg11[%c0_27, %c0_28] : memref<1x256xf32, #tpu.memory_space<vmem>>, vector<1x256xf32>
    tpu.vector_store %arg11[%c0_27, %c0_28], %54 {strides = array<i32>} : memref<1x256xf32, #tpu.memory_space<vmem>>, vector<1x256xf32>,
    %c0_i32_29 = arith.constant 0 : i32
    %56 = arith.cmpi eq, %arg1, %c0_i32_29 : i32
    %57 = arith.extui %56 : i1 to i32
    %c0_i32_30 = arith.constant 0 : i32
    %58 = arith.cmpi ne, %57, %c0_i32_30 : i32
    scf.if %58 {
      %c0_31 = arith.constant 0 : index
      %c0_32 = arith.constant 0 : index
      %59 = vector.load %arg8[%c0_31, %c0_32] : memref<4x256xf32, #tpu.memory_space<vmem>>, vector<4x256xf32>
      %cst_33 = arith.constant dense<0.000000e+00> : vector<4xf32>
      %60 = vector.multi_reduction <add>, %59, %cst_33 [1] : vector<4x256xf32> to vector<4xf32>
      %61 = vector.shape_cast %60 : vector<4xf32> to vector<4x1xf32>
      %c0_34 = arith.constant 0 : index
      %c0_35 = arith.constant 0 : index
      %c0_36 = arith.constant 0 : index
      %62 = vector.load %arg4[%c0_34, %c0_35, %c0_36] : memref<1x4x1xf32, #tpu.memory_space<vmem>>, vector<1x4x1xf32>
      %63 = vector.shape_cast %62 : vector<1x4x1xf32> to vector<4x1xf32>
      %64 = vector.shape_cast %61 : vector<4x1xf32> to vector<1x4x1xf32>
      tpu.vector_store %arg4[%c0_34, %c0_35, %c0_36], %64 {strides = array<i32>} : memref<1x4x1xf32, #tpu.memory_space<vmem>>, vector<1x4x1xf32>,
      %c0_37 = arith.constant 0 : index
      %c0_38 = arith.constant 0 : index
      %65 = vector.load %arg9[%c0_37, %c0_38] : memref<4x256xf32, #tpu.memory_space<vmem>>, vector<4x256xf32>
      %cst_39 = arith.constant dense<0.000000e+00> : vector<4xf32>
      %66 = vector.multi_reduction <add>, %65, %cst_39 [1] : vector<4x256xf32> to vector<4xf32>
      %67 = vector.shape_cast %66 : vector<4xf32> to vector<4x1xf32>
      %c0_40 = arith.constant 0 : index
      %c0_41 = arith.constant 0 : index
      %c0_42 = arith.constant 0 : index
      %68 = vector.load %arg5[%c0_40, %c0_41, %c0_42] : memref<1x4x1xf32, #tpu.memory_space<vmem>>, vector<1x4x1xf32>
      %69 = vector.shape_cast %68 : vector<1x4x1xf32> to vector<4x1xf32>
      %70 = vector.shape_cast %67 : vector<4x1xf32> to vector<1x4x1xf32>
      tpu.vector_store %arg5[%c0_40, %c0_41, %c0_42], %70 {strides = array<i32>} : memref<1x4x1xf32, #tpu.memory_space<vmem>>, vector<1x4x1xf32>,
      %c0_43 = arith.constant 0 : index
      %c0_44 = arith.constant 0 : index
      %71 = vector.load %arg10[%c0_43, %c0_44] : memref<4x256xf32, #tpu.memory_space<vmem>>, vector<4x256xf32>
      %cst_45 = arith.constant dense<0.000000e+00> : vector<4xf32>
      %72 = vector.multi_reduction <add>, %71, %cst_45 [1] : vector<4x256xf32> to vector<4xf32>
      %73 = vector.shape_cast %72 : vector<4xf32> to vector<4x1xf32>
      %c0_46 = arith.constant 0 : index
      %c0_47 = arith.constant 0 : index
      %c0_48 = arith.constant 0 : index
      %74 = vector.load %arg6[%c0_46, %c0_47, %c0_48] : memref<1x4x1xf32, #tpu.memory_space<vmem>>, vector<1x4x1xf32>
      %75 = vector.shape_cast %74 : vector<1x4x1xf32> to vector<4x1xf32>
      %76 = vector.shape_cast %73 : vector<4x1xf32> to vector<1x4x1xf32>
      tpu.vector_store %arg6[%c0_46, %c0_47, %c0_48], %76 {strides = array<i32>} : memref<1x4x1xf32, #tpu.memory_space<vmem>>, vector<1x4x1xf32>,
      %c0_49 = arith.constant 0 : index
      %c0_50 = arith.constant 0 : index
      %77 = vector.load %arg11[%c0_49, %c0_50] : memref<1x256xf32, #tpu.memory_space<vmem>>, vector<1x256xf32>
      %cst_51 = arith.constant dense<0.000000e+00> : vector<1xf32>
      %78 = vector.multi_reduction <add>, %77, %cst_51 [1] : vector<1x256xf32> to vector<1xf32>
      %79 = vector.shape_cast %78 : vector<1xf32> to vector<1x1xf32>
      %c0_52 = arith.constant 0 : index
      %c0_53 = arith.constant 0 : index
      %c0_54 = arith.constant 0 : index
      %80 = vector.load %arg7[%c0_52, %c0_53, %c0_54] : memref<1x1x1xf32, #tpu.memory_space<vmem>>, vector<1x1x1xf32>
      %81 = vector.shape_cast %80 : vector<1x1x1xf32> to vector<1x1xf32>
      %82 = vector.shape_cast %79 : vector<1x1xf32> to vector<1x1x1xf32>
      tpu.vector_store %arg7[%c0_52, %c0_53, %c0_54], %82 {strides = array<i32>} : memref<1x1x1xf32, #tpu.memory_space<vmem>>, vector<1x1x1xf32>,
    } else {
    }
    return
  }
  func.func @transform_0(%arg0: i32, %arg1: i32) -> (i32, i32, i32) {
    %c0_i32 = arith.constant 0 : i32
    %c0_i32_0 = arith.constant 0 : i32
    return %arg0, %c0_i32, %arg1 : i32, i32, i32
  }
  func.func @transform_1(%arg0: i32, %arg1: i32) -> (i32, i32, i32) {
    %c0_i32 = arith.constant 0 : i32
    %c0_i32_0 = arith.constant 0 : i32
    return %arg0, %c0_i32, %arg1 : i32, i32, i32
  }
  func.func @transform_2(%arg0: i32, %arg1: i32) -> (i32, i32, i32) {
    %c0_i32 = arith.constant 0 : i32
    %c0_i32_0 = arith.constant 0 : i32
    %c0_i32_1 = arith.constant 0 : i32
    return %arg0, %c0_i32, %c0_i32_0 : i32, i32, i32
  }
  func.func @transform_3(%arg0: i32, %arg1: i32) -> (i32, i32, i32) {
    %c0_i32 = arith.constant 0 : i32
    %c0_i32_0 = arith.constant 0 : i32
    %c0_i32_1 = arith.constant 0 : i32
    return %arg0, %c0_i32, %c0_i32_0 : i32, i32, i32
  }
  func.func @transform_4(%arg0: i32, %arg1: i32) -> (i32, i32, i32) {
    %c0_i32 = arith.constant 0 : i32
    %c0_i32_0 = arith.constant 0 : i32
    %c0_i32_1 = arith.constant 0 : i32
    return %arg0, %c0_i32, %c0_i32_0 : i32, i32, i32
  }
  func.func @transform_5(%arg0: i32, %arg1: i32) -> (i32, i32, i32) {
    %c0_i32 = arith.constant 0 : i32
    %c0_i32_0 = arith.constant 0 : i32
    %c0_i32_1 = arith.constant 0 : i32
    return %arg0, %c0_i32, %c0_i32_0 : i32, i32, i32
  }
}

</mosaic_0001>

<llo_original>
// kernel: segmentation_loss_dice_ce.1
$region0: #{segmentation_loss_dice_ce.1}
  #allocation0 [shape = 'u32[]', space=smem, size = 0x4, offset = 0x4, fixed_abs, tag = 'smem constant byte address 0x4 - core index']
  #allocation1 [shape = 'u32[144,128]{1,0:T(1,128)}', space=vmem, size = 0x12000, scoped, tag = 'internal scratch']
  #allocation2 [shape = 'f32[4,256]{1,0:T(4,128)}', space=vmem, size = 0x1000, scoped, tag = 'scratch operand']
  #allocation3 [shape = 'f32[4,256]{1,0:T(4,128)}', space=vmem, size = 0x1000, scoped, tag = 'scratch operand']
  #allocation4 [shape = 'f32[4,256]{1,0:T(4,128)}', space=vmem, size = 0x1000, scoped, tag = 'scratch operand']
  #allocation5 [shape = 'f32[1,256]{1,0:T(1,128)}', space=vmem, size = 0x400, scoped, tag = 'scratch operand']
  %s0 = inlined_call_operand.vmem [shape: f32[2,4,256], index: 0, kind: input, shape index: {}]
  %s1 = inlined_call_operand.vmem [shape: s32[2,1,256], index: 1, kind: input, shape index: {}]
  %s2 = inlined_call_operand.vmem [shape: f32[2,4,1], index: 2, kind: output, shape index: {0}]
  %s3 = inlined_call_operand.vmem [shape: f32[2,4,1], index: 3, kind: output, shape index: {1}]
  %s4 = inlined_call_operand.vmem [shape: f32[2,4,1], index: 4, kind: output, shape index: {2}]
  %s5 = inlined_call_operand.vmem [shape: f32[2,1,1], index: 5, kind: output, shape index: {3}]
  %6 = xla_tuple %s2, %s3, %s4, %s5
  %s7 = sld [smem:[#allocation0]]
  $region73: #{segmentation_loss_dice_ce.1} parent=0
    _
  %s9 = ssub.s32 1, %s7
  %s10 = scalar_select 0, %s9, %s7
  loop: start=0, step=1, limit=4
  $region2: #{segmentation_loss_dice_ce.1} parent=0 // loop_pre_header
    _
  $region3: #{segmentation_loss_dice_ce.1} parent=0 // loop_header
    %s12 = sphi 0, %s16
    %p13 = scmp.ge.s32.totalorder %s12, 4
    %s19 = sphi 0, %s31
    %s20 = sphi 0, %s27
    %s21 = sphi 0, %s19
    %s22 = sphi 0, %s20
    %s23 = sphi 0, %s21
    %s24 = sphi 0, %s22
    %s36 = sphi 0, %s38
    %s39 = sphi 0, %s36
    %s40 = sphi 0, %s39
    %s56 = sphi 0, %s40
    %s64 = sphi 0, %s66
    %s67 = sphi 0, %s64
    %s68 = sphi 0, %s67
    %s84 = sphi 0, %s68
    %s90 = sphi 0, %s92
    %s93 = sphi 0, %s90
    %s94 = sphi 0, %s93
    %s110 = sphi 0, %s94
    %s116 = sphi 0, %s118
    %s119 = sphi 0, %s116
    %s120 = sphi 0, %s119
    %s136 = sphi 0, %s120
    %s142 = sphi 0, %s144
    %s145 = sphi 0, %s142
    %s146 = sphi 0, %s145
    %s162 = sphi 0, %s146
    %s168 = sphi 0, %s170
    %s171 = sphi 0, %s168
    %s172 = sphi 0, %s171
    %s188 = sphi 0, %s172
  $region4: #{segmentation_loss_dice_ce.1} parent=0 // loop_header_branch
    %15 = sbr.rel (%p13) target = $region8
  $region5: #{segmentation_loss_dice_ce.1} parent=0 // loop_body
    %s17 = ssub.s32 %s12, 1
    %s18 = ssub.s32 %s12, 2
    %s25 = sadd.s32 1, %s20
    %p26 = scmp.ge.s32.totalorder %s25, 1
    %s27 = scalar_select %p26, 0, %s25
    %s28 = sadd.s32 1, %s19
    %s29 = scalar_select %p26, %s28, %s19
    %p30 = scmp.ge.s32.totalorder %s29, 2
    %s31 = scalar_select %p30, 0, %s29
    %s32 = ssub.s32 %s19, %s31
    %s33 = ssub.s32 %s20, %s27
    %s34 = sor.u32 %s32, %s33
    %p35 = scmp.eq.s32.totalorder %s34, 0
    %s37 = sadd.s32 %s36, 1
    %s38 = scalar_select %p35, %s36, %s37
    %p41 = pneg %p35
    %p42 = scmp.eq.s32.totalorder %s12, 1
    %p43 = por %p41, %p42
    %p44 = scmp.ne.s32.totalorder %s36, %s39
    %p45 = scmp.eq.s32.totalorder %s12, 0
    %p46 = por %p44, %p45
    %p47 = scmp.ne.s32.totalorder %s36, %s39
    %p48 = scmp.eq.s32.totalorder %s17, 1
    %p49 = por %p47, %p48
    %p50 = scmp.ne.s32.totalorder %s39, %s40
    %p51 = scmp.eq.s32.totalorder %s17, 0
    %p52 = por %p50, %p51
    %p53 = scmp.ne.s32.totalorder %s39, %s40
    %p54 = scmp.eq.s32.totalorder %s18, 1
    %p55 = por %p53, %p54
    %p57 = scmp.ne.s32.totalorder %s40, %s56
    %p58 = scmp.eq.s32.totalorder %s18, 0
    %p59 = por %p57, %p58
    %s60 = ssub.s32 %s19, %s31
    %s61 = ssub.s32 %s20, %s27
    %s62 = sor.u32 %s60, %s61
    %p63 = scmp.eq.s32.totalorder %s62, 0
    %s65 = sadd.s32 %s64, 1
    %s66 = scalar_select %p63, %s64, %s65
    %p69 = pneg %p63
    %p70 = scmp.eq.s32.totalorder %s12, 1
    %p71 = por %p69, %p70
    %p72 = scmp.ne.s32.totalorder %s64, %s67
    %p73 = scmp.eq.s32.totalorder %s12, 0
    %p74 = por %p72, %p73
    %p75 = scmp.ne.s32.totalorder %s64, %s67
    %p76 = scmp.eq.s32.totalorder %s17, 1
    %p77 = por %p75, %p76
    %p78 = scmp.ne.s32.totalorder %s67, %s68
    %p79 = scmp.eq.s32.totalorder %s17, 0
    %p80 = por %p78, %p79
    %p81 = scmp.ne.s32.totalorder %s67, %s68
    %p82 = scmp.eq.s32.totalorder %s18, 1
    %p83 = por %p81, %p82
    %p85 = scmp.ne.s32.totalorder %s68, %s84
    %p86 = scmp.eq.s32.totalorder %s18, 0
    %p87 = por %p85, %p86
    %s88 = ssub.s32 %s19, %s31
    %p89 = scmp.eq.s32.totalorder %s88, 0
    %s91 = sadd.s32 %s90, 1
    %s92 = scalar_select %p89, %s90, %s91
    %p95 = pneg %p89
    %p96 = scmp.eq.s32.totalorder %s12, 1
    %p97 = por %p95, %p96
    %p98 = scmp.ne.s32.totalorder %s90, %s93
    %p99 = scmp.eq.s32.totalorder %s12, 0
    %p100 = por %p98, %p99
    %p101 = scmp.ne.s32.totalorder %s90, %s93
    %p102 = scmp.eq.s32.totalorder %s17, 1
    %p103 = por %p101, %p102
    %p104 = scmp.ne.s32.totalorder %s93, %s94
    %p105 = scmp.eq.s32.totalorder %s17, 0
    %p106 = por %p104, %p105
    %p107 = scmp.ne.s32.totalorder %s93, %s94
    %p108 = scmp.eq.s32.totalorder %s18, 1
    %p109 = por %p107, %p108
    %p111 = scmp.ne.s32.totalorder %s94, %s110
    %p112 = scmp.eq.s32.totalorder %s18, 0
    %p113 = por %p111, %p112
    %s114 = ssub.s32 %s19, %s31
    %p115 = scmp.eq.s32.totalorder %s114, 0
    %s117 = sadd.s32 %s116, 1
    %s118 = scalar_select %p115, %s116, %s117
    %p121 = pneg %p115
    %p122 = scmp.eq.s32.totalorder %s12, 1
    %p123 = por %p121, %p122
    %p124 = scmp.ne.s32.totalorder %s116, %s119
    %p125 = scmp.eq.s32.totalorder %s12, 0
    %p126 = por %p124, %p125
    %p127 = scmp.ne.s32.totalorder %s116, %s119
    %p128 = scmp.eq.s32.totalorder %s17, 1
    %p129 = por %p127, %p128
    %p130 = scmp.ne.s32.totalorder %s119, %s120
    %p131 = scmp.eq.s32.totalorder %s17, 0
    %p132 = por %p130, %p131
    %p133 = scmp.ne.s32.totalorder %s119, %s120
    %p134 = scmp.eq.s32.totalorder %s18, 1
    %p135 = por %p133, %p134
    %p137 = scmp.ne.s32.totalorder %s120, %s136
    %p138 = scmp.eq.s32.totalorder %s18, 0
    %p139 = por %p137, %p138
    %s140 = ssub.s32 %s19, %s31
    %p141 = scmp.eq.s32.totalorder %s140, 0
    %s143 = sadd.s32 %s142, 1
    %s144 = scalar_select %p141, %s142, %s143
    %p147 = pneg %p141
    %p148 = scmp.eq.s32.totalorder %s12, 1
    %p149 = por %p147, %p148
    %p150 = scmp.ne.s32.totalorder %s142, %s145
    %p151 = scmp.eq.s32.totalorder %s12, 0
    %p152 = por %p150, %p151
    %p153 = scmp.ne.s32.totalorder %s142, %s145
    %p154 = scmp.eq.s32.totalorder %s17, 1
    %p155 = por %p153, %p154
    %p156 = scmp.ne.s32.totalorder %s145, %s146
    %p157 = scmp.eq.s32.totalorder %s17, 0
    %p158 = por %p156, %p157
    %p159 = scmp.ne.s32.totalorder %s145, %s146
    %p160 = scmp.eq.s32.totalorder %s18, 1
    %p161 = por %p159, %p160
    %p163 = scmp.ne.s32.totalorder %s146, %s162
    %p164 = scmp.eq.s32.totalorder %s18, 0
    %p165 = por %p163, %p164
    %s166 = ssub.s32 %s19, %s31
    %p167 = scmp.eq.s32.totalorder %s166, 0
    %s169 = sadd.s32 %s168, 1
    %s170 = scalar_select %p167, %s168, %s169
    %p173 = pneg %p167
    %p174 = scmp.eq.s32.totalorder %s12, 1
    %p175 = por %p173, %p174
    %p176 = scmp.ne.s32.totalorder %s168, %s171
    %p177 = scmp.eq.s32.totalorder %s12, 0
    %p178 = por %p176, %p177
    %p179 = scmp.ne.s32.totalorder %s168, %s171
    %p180 = scmp.eq.s32.totalorder %s17, 1
    %p181 = por %p179, %p180
    %p182 = scmp.ne.s32.totalorder %s171, %s172
    %p183 = scmp.eq.s32.totalorder %s17, 0
    %p184 = por %p182, %p183
    %p185 = scmp.ne.s32.totalorder %s171, %s172
    %p186 = scmp.eq.s32.totalorder %s18, 1
    %p187 = por %p185, %p186
    %p189 = scmp.ne.s32.totalorder %s172, %s188
    %p190 = scmp.eq.s32.totalorder %s18, 0
    %p191 = por %p189, %p190
    %p192 = scmp.le.s32.totalorder 1, %s12
    %p193 = scmp.lt.s32.totalorder %s12, 3
    %p194 = pnand %p192, %p193
    %p195 = pneg %p194
    // Predicated region
    $region9: #{segmentation_loss_dice_ce.1} parent=5 // pred_check
      _
    $region10: #{segmentation_loss_dice_ce.1} parent=5 // pred_check_branch
      %197 = sbr.rel (%p194) target = $region12
    $region11: #{segmentation_loss_dice_ce.1} parent=5 // pred_region
      %s198 = ssub.s32 %s12, 1
    $region12: #{segmentation_loss_dice_ce.1} parent=5 // pred_fallthru
      _
    %p199 = scmp.lt.s32.totalorder %s12, 2
    // Predicated region
    $region13: #{segmentation_loss_dice_ce.1} parent=5 // pred_check
      %p200 = pneg %p199
    $region14: #{segmentation_loss_dice_ce.1} parent=5 // pred_check_branch
      %202 = sbr.rel (%p200) target = $region16
    $region15: #{segmentation_loss_dice_ce.1} parent=5 // pred_region
      // Predicated region
      $region17: #{segmentation_loss_dice_ce.1} parent=15 // pred_check
        %p203 = pneg %p46
      $region18: #{segmentation_loss_dice_ce.1} parent=15 // pred_check_branch
        %205 = sbr.rel (%p203) target = $region20
      $region19: #{segmentation_loss_dice_ce.1} parent=15 // pred_region
        %s206 = smul.u32 2, %s20
        %p207 = scmp.lt.s32.totalorder %s19, 1
        %s208 = scalar_select %p207, %s19, 1
        %p209 = scmp.lt.s32.totalorder %s206, 1
        %s210 = scalar_select %p209, %s206, 1
        %s211 = smul.addr %s208, 2
        %s212 = sadd.s32 %s210, %s211
        %s213 = smul.addr %s212, 4
        %s214 = scalar_lea.vmem %s0, %s213
        %s215 = smul.u32 2, %s20
      $region20: #{segmentation_loss_dice_ce.1} parent=15 // pred_fallthru
        _
      // Predicated region
      $region21: #{segmentation_loss_dice_ce.1} parent=15 // pred_check
        %p216 = pneg %p74
      $region22: #{segmentation_loss_dice_ce.1} parent=15 // pred_check_branch
        %218 = sbr.rel (%p216) target = $region24
      $region23: #{segmentation_loss_dice_ce.1} parent=15 // pred_region
        %s219 = smul.u32 2, %s20
        %p220 = scmp.lt.s32.totalorder %s19, 1
        %s221 = scalar_select %p220, %s19, 1
        %p222 = scmp.lt.s32.totalorder %s219, 1
        %s223 = scalar_select %p222, %s219, 1
        %s224 = smul.addr %s221, 2
        %s225 = sadd.s32 %s223, %s224
        %s226 = scalar_lea.vmem %s1, %s225
        %s227 = smul.u32 2, %s20
      $region24: #{segmentation_loss_dice_ce.1} parent=15 // pred_fallthru
        _
    $region16: #{segmentation_loss_dice_ce.1} parent=5 // pred_fallthru
      _
    %p228 = scmp.le.s32.totalorder 1, %s12
    %p229 = scmp.lt.s32.totalorder %s12, 3
    %p230 = pnand %p228, %p229
    %p231 = pneg %p230
    // Predicated region
    $region25: #{segmentation_loss_dice_ce.1} parent=5 // pred_check
      _
    $region26: #{segmentation_loss_dice_ce.1} parent=5 // pred_check_branch
      %233 = sbr.rel (%p230) target = $region28
    $region27: #{segmentation_loss_dice_ce.1} parent=5 // pred_region
      %s234 = ssub.s32 %s12, 1
      %s235 = smul.u32 2, %s22
      %p236 = scmp.lt.s32.totalorder %s21, 1
      %s237 = scalar_select %p236, %s21, 1
      %p238 = scmp.lt.s32.totalorder %s235, 1
      %s239 = scalar_select %p238, %s235, 1
      %s240 = smul.addr %s237, 2
      %s241 = sadd.s32 %s239, %s240
      %s242 = smul.addr %s241, 4
      %s243 = scalar_lea.vmem %s0, %s242
      %p244 = pneg %p52
      %p245 = pneg %p49
      %s246 = smul.u32 2, %s22
      %p247 = scmp.lt.s32.totalorder %s21, 1
      %s248 = scalar_select %p247, %s21, 1
      %p249 = scmp.lt.s32.totalorder %s246, 1
      %s250 = scalar_select %p249, %s246, 1
      %s251 = smul.addr %s248, 2
      %s252 = sadd.s32 %s250, %s251
      %s253 = scalar_lea.vmem %s1, %s252
      %p254 = pneg %p80
      %p255 = pneg %p77
      %p256 = pneg %p106
      %p257 = pneg %p103
      %p258 = scmp.lt.s32.totalorder %s21, 1
      %s259 = scalar_select %p258, %s21, 1
      %s260 = smul.addr %s259, 4
      %s261 = scalar_lea.vmem %s2, %s260
      %p262 = pneg %p132
      %p263 = pneg %p129
      %p264 = scmp.lt.s32.totalorder %s21, 1
      %s265 = scalar_select %p264, %s21, 1
      %s266 = smul.addr %s265, 4
      %s267 = scalar_lea.vmem %s3, %s266
      %p268 = pneg %p158
      %p269 = pneg %p155
      %p270 = scmp.lt.s32.totalorder %s21, 1
      %s271 = scalar_select %p270, %s21, 1
      %s272 = smul.addr %s271, 4
      %s273 = scalar_lea.vmem %s4, %s272
      %p274 = pneg %p184
      %p275 = pneg %p181
      %p276 = scmp.lt.s32.totalorder %s21, 1
      %s277 = scalar_select %p276, %s21, 1
      %s278 = scalar_lea.vmem %s5, %s277
      %s279 = smul.u32 2, %s22
      %p280 = scmp.lt.s32.totalorder %s21, 1
      %s281 = scalar_select %p280, %s21, 1
      %p282 = scmp.lt.s32.totalorder %s279, 1
      %s283 = scalar_select %p282, %s279, 1
      %s284 = smul.addr %s281, 2
      %s285 = sadd.s32 %s283, %s284
      %s286 = smul.addr %s285, 4
      %s287 = scalar_lea.vmem %s0, %s286
      %s288 = smul.u32 2, %s22
      %s289 = smul.u32 2, %s22
      %p290 = scmp.lt.s32.totalorder %s21, 1
      %s291 = scalar_select %p290, %s21, 1
      %p292 = scmp.lt.s32.totalorder %s289, 1
      %s293 = scalar_select %p292, %s289, 1
      %s294 = smul.addr %s291, 2
      %s295 = sadd.s32 %s293, %s294
      %s296 = scalar_lea.vmem %s1, %s295
      %s297 = smul.u32 2, %s22
      %p298 = scmp.lt.s32.totalorder %s21, 1
      %s299 = scalar_select %p298, %s21, 1
      %s300 = smul.addr %s299, 4
      %s301 = scalar_lea.vmem %s2, %s300
      %p302 = scmp.lt.s32.totalorder %s21, 1
      %s303 = scalar_select %p302, %s21, 1
      %s304 = smul.addr %s303, 4
      %s305 = scalar_lea.vmem %s3, %s304
      %p306 = scmp.lt.s32.totalorder %s21, 1
      %s307 = scalar_select %p306, %s21, 1
      %s308 = smul.addr %s307, 4
      %s309 = scalar_lea.vmem %s4, %s308
      %p310 = scmp.lt.s32.totalorder %s21, 1
      %s311 = scalar_select %p310, %s21, 1
      %s312 = scalar_lea.vmem %s5, %s311
      %p313 = scmp.eq.s32.totalorder %s22, 0
      // Predicated region
      $region29: #{segmentation_loss_dice_ce.1} parent=27 // pred_check
        %p314 = pneg %p313
      $region30: #{segmentation_loss_dice_ce.1} parent=27 // pred_check_branch
        %316 = sbr.rel (%p314) target = $region32
      $region31: #{segmentation_loss_dice_ce.1} parent=27 // pred_region
        %317 = vst [vmem:[#allocation2] sm:$0xff] 0.0
        %318 = vst [vmem:[#allocation3] sm:$0xff] 0.0
        %319 = vst [vmem:[#allocation4] sm:$0xff] 0.0
        %v320 = vlaneseq
        %vm321 = vcmp.ge.s32.totalorder %v320, 0
        %vm322 = vcmp.lt.s32.totalorder %v320, 256
        %vm323 = vmand %vm321, %vm322
        %324 = vst.msk [vmem:[#allocation5] sm:$0x3] %vm323, 0.0
      $region32: #{segmentation_loss_dice_ce.1} parent=27 // pred_fallthru
        _
      %v325 = vld [vmem:[%s287] sm:$0xff]
      %v326 = vld [vmem:[%s296] sm:$0x3]
      %v327 = vlaneseq
      %v328 = vand.u32 %v327, 127
      %v329 = vadd.s32 %v328, 128
      %s330 = smul.u32 %s22, 256
      %v331 = vstv %s330
      %v332 = vadd.s32 %v328, %v331
      %v333 = vadd.s32 %v329, %v331
      %vm334 = vcmp.lt.s32.totalorder %v332, 256
      %vm335 = vcmp.lt.s32.totalorder %v333, 256
      %v336 = vlaneseq
      %v337 = vshrl.u32 %v336, 7
      %v338 = vlaneseq
      %v339 = vshrl.u32 %v338, 7
      %v340 = vsub.s32 0, %v339
      %v341 = vrot.slane %v326, %v340
      %v342 = vlaneseq
      %v343 = vshrl.u32 %v342, 7
      %v344 = vsub.s32 1, %v343
      %v345 = vrot.slane %v326, %v344
      %vm346 = vcmp.eq.s32.totalorder %v337, %v341
      %vm347 = vcmp.eq.s32.totalorder %v337, %v345
      %v348 = vsel %vm334, 1, 0
      %v349 = vsel %vm335, 1, 0
      %vm350 = vcmp.eq.s32.totalorder %v348, 1
      %vm351 = vcmp.eq.s32.totalorder %v349, 1
      %vm352 = vmand %vm350, %vm346
      %vm353 = vmand %vm351, %vm347
      %v354 = vsel %vm352, 1.0, 0.0
      %v355 = vsel %vm353, 1.0, 0.0
      %v357 = vcombine.high %v325, %v325
      %vm359 = vcmask 1043456
      %v360 = vsel %vm359, %v325, -inf
      %v361 = vrot.slane %v360, 4
      %v362 = vmax.f32 %v360, %v361
      %v363 = vrot.slane %v362, 2
      %v364 = vmax.f32 %v362, %v363
      %v365 = vrot.slane %v364, 1
      %v366 = vmax.f32 %v364, %v365
      %v367 = vsel %vm359, %v357, -inf
      %v368 = vrot.slane %v367, 4
      %v369 = vmax.f32 %v367, %v368
      %v370 = vrot.slane %v369, 2
      %v371 = vmax.f32 %v369, %v370
      %v372 = vrot.slane %v371, 1
      %v373 = vmax.f32 %v371, %v372
      %v376 = vcombine.low %v366, %v373
      %v378 = vsub.f32 %v325, %v376
      %v379 = vmul.f32 %v378, 1.442695
      %v380 = vpow.pop %v379
      %v382 = vcombine.high %v380, %v380
      %v384 = vsel %vm359, %v380, 0.0
      %v385 = vrot.slane %v384, 4
      %v386 = vadd.f32 %v384, %v385
      %v387 = vrot.slane %v386, 2
      %v388 = vadd.f32 %v386, %v387
      %v389 = vrot.slane %v388, 1
      %v390 = vadd.f32 %v388, %v389
      %v391 = vsel %vm359, %v382, 0.0
      %v392 = vrot.slane %v391, 4
      %v393 = vadd.f32 %v391, %v392
      %v394 = vrot.slane %v393, 2
      %v395 = vadd.f32 %v393, %v394
      %v396 = vrot.slane %v395, 1
      %v397 = vadd.f32 %v395, %v396
      %v398 = vrcp.pop %v390
      %v399 = vrcp.pop %v397
      %v402 = vcombine.low %v398, %v399
      %v404 = vmul.f32 %v380, %v402
      %v406 = vcombine.high %v404, %v404
      %v408 = vsel %vm350, %v404, 0.0
      %v409 = vsel %vm351, %v406, 0.0
      %v410 = vmul.f32 %v354, %v325
      %v411 = vmul.f32 %v355, %v357
      %v412 = vsel %vm359, %v410, 0.0
      %v413 = vrot.slane %v412, 4
      %v414 = vadd.f32 %v412, %v413
      %v415 = vrot.slane %v414, 2
      %v416 = vadd.f32 %v414, %v415
      %v417 = vrot.slane %v416, 1
      %v418 = vadd.f32 %v416, %v417
      %v419 = vsel %vm359, %v411, 0.0
      %v420 = vrot.slane %v419, 4
      %v421 = vadd.f32 %v419, %v420
      %v422 = vrot.slane %v421, 2
      %v423 = vadd.f32 %v421, %v422
      %v424 = vrot.slane %v423, 1
      %v425 = vadd.f32 %v423, %v424
      %v426 = vlog2.pop %v390
      %v427 = vmul.f32 %v426, 0.6931472
      %v428 = vlog2.pop %v397
      %v429 = vmul.f32 %v428, 0.6931472
      %v430 = vadd.f32 %v427, %v366
      %v431 = vadd.f32 %v429, %v373
      %v432 = vsub.f32 %v430, %v418
      %v433 = vsub.f32 %v431, %v425
      %v434 = vsel %vm334, %v432, 0.0
      %v435 = vsel %vm335, %v433, 0.0
      %v436 = vld [vmem:[#allocation2] sm:$0xff]
      %v437 = vmul.f32 %v408, %v354
      %v438 = vmul.f32 %v409, %v355
      %v441 = vcombine.low %v437, %v438
      %v443 = vadd.f32 %v436, %v441
      %444 = vst [vmem:[#allocation2] sm:$0xff] %v443
      %v445 = vld [vmem:[#allocation3] sm:$0xff]
      %v448 = vcombine.low %v408, %v409
      %v450 = vadd.f32 %v445, %v448
      %451 = vst [vmem:[#allocation3] sm:$0xff] %v450
      %v452 = vld [vmem:[#allocation4] sm:$0xff]
      %v455 = vcombine.low %v354, %v355
      %v457 = vadd.f32 %v452, %v455
      %458 = vst [vmem:[#allocation4] sm:$0xff] %v457
      %v459 = vld [vmem:[#allocation5] sm:$0x3]
      %v462 = vcombine.low %v434, %v435
      %v464 = vunpack.c.l.s4 1966171168
      %v465 = vunpack.c.0.s8 %v464
      %v466 = vlaneseq
      %v467 = vshrl.u32 %v466, 7
      %v468 = vsub.s32 %v465, %v467
      %v469 = vrot.slane %v462, %v468
      %v471 = vunpack.c.l.s4 1966171168
      %v472 = vunpack.c.0.s8 %v471
      %v473 = vlaneseq
      %v474 = vshrl.u32 %v473, 7
      %v475 = vsub.s32 %v472, %v474
      %v476 = vrot.slane %v469, %v475
      %v478 = vadd.f32 %v459, %v476
      %v479 = vlaneseq
      %vm480 = vcmp.ge.s32.totalorder %v479, 0
      %vm481 = vcmp.lt.s32.totalorder %v479, 256
      %vm482 = vmand %vm480, %vm481
      %483 = vst.msk [vmem:[#allocation5] sm:$0x3] %vm482, %v478
      // Predicated region
      $region33: #{segmentation_loss_dice_ce.1} parent=27 // pred_check
        %p484 = pneg %p313
      $region34: #{segmentation_loss_dice_ce.1} parent=27 // pred_check_branch
        %486 = sbr.rel (%p484) target = $region36
      $region35: #{segmentation_loss_dice_ce.1} parent=27 // pred_region
        %v487 = vld [vmem:[#allocation2] sm:$0xff]
        %v489 = vcombine.high %v487, %v487
        %v491 = vsel %vm359, %v487, 0.0
        %v492 = vsel %vm359, %v489, 0.0
        %v493 = vadd.f32 %v491, %v492
        %494 = vadd.xlane.f32.xlu0 %v493
        %v495 = vpop.xlane.xlu0 %494
        %vm496 = vcmask 3072
        %497 = vst.msk [vmem:[%s301] sm:$0xf] %vm496, %v495
        %v498 = vld [vmem:[#allocation3] sm:$0xff]
        %v500 = vcombine.high %v498, %v498
        %v502 = vsel %vm359, %v498, 0.0
        %v503 = vsel %vm359, %v500, 0.0
        %v504 = vadd.f32 %v502, %v503
        %505 = vadd.xlane.f32.xlu0 %v504
        %v506 = vpop.xlane.xlu0 %505
        %507 = vst.msk [vmem:[%s305] sm:$0xf] %vm496, %v506
        %v508 = vld [vmem:[#allocation4] sm:$0xff]
        %v510 = vcombine.high %v508, %v508
        %v512 = vsel %vm359, %v508, 0.0
        %v513 = vsel %vm359, %v510, 0.0
        %v514 = vadd.f32 %v512, %v513
        %515 = vadd.xlane.f32.xlu0 %v514
        %v516 = vpop.xlane.xlu0 %515
        %517 = vst.msk [vmem:[%s309] sm:$0xf] %vm496, %v516
        %v518 = vld [vmem:[#allocation5] sm:$0x3]
        %v520 = vlaneseq
        %v521 = vshrl.u32 %v520, 7
        %v522 = vsub.s32 0, %v521
        %v523 = vrot.slane %v518, %v522
        %v524 = vlaneseq
        %v525 = vshrl.u32 %v524, 7
        %v526 = vsub.s32 1, %v525
        %v527 = vrot.slane %v518, %v526
        %vm530 = vcmask 1040384
        %v531 = vsel %vm530, %v523, 0.0
        %v532 = vsel %vm530, %v527, 0.0
        %v533 = vadd.f32 %v531, %v532
        %534 = vadd.xlane.f32.xlu0 %v533
        %v535 = vpop.xlane.xlu0 %534
        %vm536 = vcmask 0
        %537 = vst.msk [vmem:[%s312] sm:$0x1] %vm536, %v535
      $region36: #{segmentation_loss_dice_ce.1} parent=27 // pred_fallthru
        _
      %p538 = scmp.lt.s32.totalorder %s21, 1
      %s539 = scalar_select %p538, %s21, 1
      %s540 = smul.addr %s539, 4
      %s541 = scalar_lea.vmem %s2, %s540
      %p542 = scmp.lt.s32.totalorder %s21, 1
      %s543 = scalar_select %p542, %s21, 1
      %s544 = smul.addr %s543, 4
      %s545 = scalar_lea.vmem %s3, %s544
      %p546 = scmp.lt.s32.totalorder %s21, 1
      %s547 = scalar_select %p546, %s21, 1
      %s548 = smul.addr %s547, 4
      %s549 = scalar_lea.vmem %s4, %s548
      %p550 = scmp.lt.s32.totalorder %s21, 1
      %s551 = scalar_select %p550, %s21, 1
      %s552 = scalar_lea.vmem %s5, %s551
      // Predicated region
      $region37: #{segmentation_loss_dice_ce.1} parent=27 // pred_check
        %p553 = pneg %p103
      $region38: #{segmentation_loss_dice_ce.1} parent=27 // pred_check_branch
        %555 = sbr.rel (%p553) target = $region40
      $region39: #{segmentation_loss_dice_ce.1} parent=27 // pred_region
        _
      $region40: #{segmentation_loss_dice_ce.1} parent=27 // pred_fallthru
        _
      // Predicated region
      $region41: #{segmentation_loss_dice_ce.1} parent=27 // pred_check
        %p556 = pneg %p129
      $region42: #{segmentation_loss_dice_ce.1} parent=27 // pred_check_branch
        %558 = sbr.rel (%p556) target = $region44
      $region43: #{segmentation_loss_dice_ce.1} parent=27 // pred_region
        _
      $region44: #{segmentation_loss_dice_ce.1} parent=27 // pred_fallthru
        _
      // Predicated region
      $region45: #{segmentation_loss_dice_ce.1} parent=27 // pred_check
        %p559 = pneg %p155
      $region46: #{segmentation_loss_dice_ce.1} parent=27 // pred_check_branch
        %561 = sbr.rel (%p559) target = $region48
      $region47: #{segmentation_loss_dice_ce.1} parent=27 // pred_region
        _
      $region48: #{segmentation_loss_dice_ce.1} parent=27 // pred_fallthru
        _
      // Predicated region
      $region49: #{segmentation_loss_dice_ce.1} parent=27 // pred_check
        %p562 = pneg %p181
      $region50: #{segmentation_loss_dice_ce.1} parent=27 // pred_check_branch
        %564 = sbr.rel (%p562) target = $region52
      $region51: #{segmentation_loss_dice_ce.1} parent=27 // pred_region
        _
      $region52: #{segmentation_loss_dice_ce.1} parent=27 // pred_fallthru
        _
    $region28: #{segmentation_loss_dice_ce.1} parent=5 // pred_fallthru
      _
    %p565 = scmp.le.s32.totalorder 2, %s12
    // Predicated region
    $region53: #{segmentation_loss_dice_ce.1} parent=5 // pred_check
      %p566 = pneg %p565
    $region54: #{segmentation_loss_dice_ce.1} parent=5 // pred_check_branch
      %568 = sbr.rel (%p566) target = $region56
    $region55: #{segmentation_loss_dice_ce.1} parent=5 // pred_region
      %s569 = ssub.s32 %s12, 2
      // Predicated region
      $region57: #{segmentation_loss_dice_ce.1} parent=55 // pred_check
        %p570 = pneg %p109
      $region58: #{segmentation_loss_dice_ce.1} parent=55 // pred_check_branch
        %572 = sbr.rel (%p570) target = $region60
      $region59: #{segmentation_loss_dice_ce.1} parent=55 // pred_region
        %p573 = scmp.lt.s32.totalorder %s23, 1
        %s574 = scalar_select %p573, %s23, 1
        %s575 = smul.addr %s574, 4
        %s576 = scalar_lea.vmem %s2, %s575
      $region60: #{segmentation_loss_dice_ce.1} parent=55 // pred_fallthru
        _
      // Predicated region
      $region61: #{segmentation_loss_dice_ce.1} parent=55 // pred_check
        %p577 = pneg %p135
      $region62: #{segmentation_loss_dice_ce.1} parent=55 // pred_check_branch
        %579 = sbr.rel (%p577) target = $region64
      $region63: #{segmentation_loss_dice_ce.1} parent=55 // pred_region
        %p580 = scmp.lt.s32.totalorder %s23, 1
        %s581 = scalar_select %p580, %s23, 1
        %s582 = smul.addr %s581, 4
        %s583 = scalar_lea.vmem %s3, %s582
      $region64: #{segmentation_loss_dice_ce.1} parent=55 // pred_fallthru
        _
      // Predicated region
      $region65: #{segmentation_loss_dice_ce.1} parent=55 // pred_check
        %p584 = pneg %p161
      $region66: #{segmentation_loss_dice_ce.1} parent=55 // pred_check_branch
        %586 = sbr.rel (%p584) target = $region68
      $region67: #{segmentation_loss_dice_ce.1} parent=55 // pred_region
        %p587 = scmp.lt.s32.totalorder %s23, 1
        %s588 = scalar_select %p587, %s23, 1
        %s589 = smul.addr %s588, 4
        %s590 = scalar_lea.vmem %s4, %s589
      $region68: #{segmentation_loss_dice_ce.1} parent=55 // pred_fallthru
        _
      // Predicated region
      $region69: #{segmentation_loss_dice_ce.1} parent=55 // pred_check
        %p591 = pneg %p187
      $region70: #{segmentation_loss_dice_ce.1} parent=55 // pred_check_branch
        %593 = sbr.rel (%p591) target = $region72
      $region71: #{segmentation_loss_dice_ce.1} parent=55 // pred_region
        %p594 = scmp.lt.s32.totalorder %s23, 1
        %s595 = scalar_select %p594, %s23, 1
        %s596 = scalar_lea.vmem %s5, %s595
      $region72: #{segmentation_loss_dice_ce.1} parent=55 // pred_fallthru
        _
    $region56: #{segmentation_loss_dice_ce.1} parent=5 // pred_fallthru
      _
  $region6: #{segmentation_loss_dice_ce.1} parent=0 // loop_footer
    %s16 = sadd.s32 1, %s12
  $region7: #{segmentation_loss_dice_ce.1} parent=0 // loop_footer_branch
    %11 = sbr.rel target = $region3
  $region8: #{segmentation_loss_dice_ce.1} parent=0 // loop_exit
    _

</llo_original>
